<compile_context>
chip_gen: v7x
topology: tpu7x:2x2x1
jax: 0.10.0
libtpu: 0.0.40
codegen_flags: <defaults>
</compile_context>

<pallas_src>
import functools
import math

import jax
import jax.numpy as jnp
from jax.experimental import pallas as pl
from jax.experimental.pallas import tpu as pltpu


def _round_up(a: int, b: int) -> int:
    return ((a + b - 1) // b) * b


def _cdiv(a: int, b: int) -> int:
    return (a + b - 1) // b


def _width_connection_kernel(x_ref, g_ref, at_ref, sa_ref, bv_ref, sb_ref, sc_ref,
                             mix_ref, beta_ref, *, eps):
    # Per grid step:
    #   x_ref   : (1, S, tl, D)  original residual streams (token tile)
    #   g_ref   : (1, 1, 1, D)   sqrt(D) * (gamma + 1), f32
    #   at_ref  : (T, 1, 1, D)   dynamic_alpha_fn^T, f32
    #   sa_ref  : (T, S, 1, 1)   static_alpha^T, f32
    #   bv_ref  : (1, 1, 1, D)   dynamic_beta_fn, f32
    #   sb_ref  : (1, S, 1, 1)   static_beta, f32
    #   sc_ref  : SMEM (2,) f32  [dynamic_alpha_scale, dynamic_beta_scale]
    #   mix_ref : (1, T, tl, D)  alpha-mixed streams (views + new residual streams)
    #   beta_ref: (1, S, tl, 1)  depth-connection weights
    x = x_ref[...].astype(jnp.float32)                            # (1,S,tl,D)
    sumsq = jnp.sum(x * x, axis=-1, keepdims=True)                # lane reduce -> (1,S,tl,1)
    inv = jax.lax.rsqrt(jnp.maximum(sumsq, eps * eps))            # EUP; == 1/max(||x||,eps)
    normed = (x * inv) * g_ref[...]                               # RMSNorm * sqrt(D)*(gamma+1)

    a_scale = sc_ref[0]
    b_scale = sc_ref[1]

    num_t = at_ref.shape[0]                                        # T = S + V (tiny, static)
    for t in range(num_t):                                         # static unroll
        wc_t = jnp.sum(normed * at_ref[t][None], axis=-1, keepdims=True)      # (1,S,tl,1)
        alpha_t = jnp.tanh(wc_t) * a_scale + sa_ref[t][None]                   # (1,S,tl,1)
        # mix over streams: S is a leading (non-tiled) axis -> plain vector adds
        mix_ref[:, t, :, :] = jnp.sum(alpha_t * x, axis=1).astype(mix_ref.dtype)

    dc = jnp.sum(normed * bv_ref[...], axis=-1, keepdims=True)                 # (1,S,tl,1)
    beta_ref[...] = (jnp.tanh(dc) * b_scale + sb_ref[...]).astype(beta_ref.dtype)


def hyper_connections_width(residuals, *, gamma, dynamic_alpha_fn, dynamic_alpha_scale,
                            static_alpha, dynamic_beta_fn, dynamic_beta_scale,
                            static_beta, num_residual_streams, num_input_views=1,
                            eps=1e-12, tile_bytes=4 * 1024 * 1024, vmem_limit_bytes=None):
    """Fused width_connection. residuals: (batch*S, ..., D).

    Returns (branch_input, mixed_residual_streams, beta) in the module's
    'b ... d' / 'b ... t d' / 'b ... s' layouts.
    """
    S = int(num_residual_streams)
    V = int(num_input_views)
    T = S + V
    D = residuals.shape[-1]
    assert gamma.shape == (D,)
    assert dynamic_alpha_fn.shape == (D, T)
    assert static_alpha.shape == (S, T)
    assert dynamic_beta_fn.shape == (D,)
    assert static_beta.shape == (S,)
    lead = residuals.shape[0]
    assert lead % S == 0, "leading dim must be batch * num_residual_streams"
    b = lead // S
    mid = residuals.shape[1:-1]
    L = int(math.prod(mid)) if mid else 1

    # '(b s) ... d -> b s (...) d' is a pure reshape (no data movement).
    x4 = residuals.reshape(b, S, L, D)

    f32 = jnp.float32
    # Fold scale * (gamma + 1) once, outside the hot loop.
    g = ((float(D) ** 0.5) * (gamma.astype(f32) + 1.0)).reshape(1, 1, 1, D)
    at = jnp.transpose(dynamic_alpha_fn.astype(f32)).reshape(T, 1, 1, D)
    sa = jnp.transpose(static_alpha.astype(f32)).reshape(T, S, 1, 1)
    bv = dynamic_beta_fn.astype(f32).reshape(1, 1, 1, D)
    sb = static_beta.astype(f32).reshape(1, S, 1, 1)
    scales = jnp.stack([jnp.asarray(dynamic_alpha_scale, f32).reshape(()),
                        jnp.asarray(dynamic_beta_scale, f32).reshape(())])

    itemsize = jnp.dtype(residuals.dtype).itemsize
    sub = {4: 8, 2: 16, 1: 32}.get(itemsize, 8)   # sublane multiple for this dtype
    dpad = _round_up(D, 128)                      # lane padding (VMEM footprint)

    # Token tile along L: sized from a VMEM byte budget using the *real* dtype
    # and padded layout, capped so the grid keeps >= ~8 steps (feeds both v7x
    # TensorCores), aligned to the dtype's sublane multiple.
    if L <= sub:
        tl = L
    else:
        per_tok = (S + T) * dpad * itemsize + S * 128 * 4   # x + mix + beta blocks per token
        tl = max(tile_bytes // per_tok, sub)
        tl = min(tl, max(_cdiv(L, 8), sub))
        tl = min(tl, L)
        tl = _round_up(tl, sub)

    grid = (b, _cdiv(L, tl))

    if vmem_limit_bytes is None:
        # double-buffered I/O blocks + f32 temporaries, with slack; keep below
        # v7x's 64 MiB physical VMEM.
        blk_io = (S + T) * tl * dpad * itemsize + S * tl * 128 * 4
        f32_tmp = (2 * S + 2) * tl * dpad * 4
        est = 2 * blk_io + f32_tmp + (4 << 20)
        vmem_limit_bytes = max(32 << 20, min(int(1.5 * est), 56 << 20))

    ntok = b * L
    cost = pl.CostEstimate(
        flops=ntok * S * D * (3 + 2 * (T + 1)) + 2 * ntok * S * T * D,
        transcendentals=ntok * S * (T + 2),
        bytes_accessed=(S + T) * ntok * D * itemsize + ntok * S * 4
                       + (2 * D + D * T + S * T + S) * 4,
    )

    kernel = functools.partial(_width_connection_kernel, eps=float(eps))

    mix4, beta4 = pl.pallas_call(
        kernel,
        out_shape=(jax.ShapeDtypeStruct((b, T, L, D), residuals.dtype),
                   jax.ShapeDtypeStruct((b, S, L, 1), jnp.float32)),
        grid_spec=pltpu.PrefetchScalarGridSpec(
            num_scalar_prefetch=0,
            grid=grid,
            in_specs=[
                pl.BlockSpec((1, S, tl, D), lambda bi, li: (bi, 0, li, 0)),
                pl.BlockSpec((1, 1, 1, D), lambda bi, li: (0, 0, 0, 0)),
                pl.BlockSpec((T, 1, 1, D), lambda bi, li: (0, 0, 0, 0)),
                pl.BlockSpec((T, S, 1, 1), lambda bi, li: (0, 0, 0, 0)),
                pl.BlockSpec((1, 1, 1, D), lambda bi, li: (0, 0, 0, 0)),
                pl.BlockSpec((1, S, 1, 1), lambda bi, li: (0, 0, 0, 0)),
                pl.BlockSpec(memory_space=pltpu.MemorySpace.SMEM),
            ],
            out_specs=(
                pl.BlockSpec((1, T, tl, D), lambda bi, li: (bi, 0, li, 0)),
                pl.BlockSpec((1, S, tl, 1), lambda bi, li: (bi, 0, li, 0)),
            ),
        ),
        compiler_params=pltpu.CompilerParams(
            dimension_semantics=("parallel", "parallel"),
            vmem_limit_bytes=int(vmem_limit_bytes),
        ),
        cost_estimate=cost,
    )(x4, g, at, sa, bv, sb, scales)

    # Back to the module's return layout (in production the kernel-native
    # (b, S/T, ..., D) layout could be kept to avoid these transposes).
    mix = jnp.moveaxis(mix4.reshape((b, T) + mid + (D,)), 1, -2)   # (b, *mid, T, D)
    beta = jnp.moveaxis(beta4.reshape((b, S) + mid), 1, -1)        # (b, *mid, S)
    if V == 1:
        branch_input = mix[..., 0, :]
    else:
        branch_input = jnp.moveaxis(mix[..., :V, :], -2, 0)
    residual_streams = mix[..., V:, :]
    return branch_input, residual_streams, beta


def width_connection_reference(residuals, *, gamma, dynamic_alpha_fn, dynamic_alpha_scale,
                               static_alpha, dynamic_beta_fn, dynamic_beta_scale,
                               static_beta, num_residual_streams, num_input_views=1,
                               eps=1e-12):
    S, V = num_residual_streams, num_input_views
    D = residuals.shape[-1]
    b = residuals.shape[0] // S
    mid = residuals.shape[1:-1]
    f32 = jnp.float32
    x = jnp.moveaxis(residuals.reshape((b, S) + mid + (D,)), 1, -2).astype(f32)
    norm = jnp.sqrt(jnp.sum(x * x, axis=-1, keepdims=True))
    normed = x / jnp.maximum(norm, eps) * (float(D) ** 0.5) * (gamma.astype(f32) + 1.0)
    alpha = jnp.tanh(normed @ dynamic_alpha_fn.astype(f32)) * dynamic_alpha_scale \
        + static_alpha.astype(f32)
    beta = jnp.tanh(normed @ dynamic_beta_fn.astype(f32)) * dynamic_beta_scale \
        + static_beta.astype(f32)
    mix = jnp.einsum('...st,...sd->...td', alpha, x)
    if V == 1:
        branch_input = mix[..., 0, :]
    else:
        branch_input = jnp.moveaxis(mix[..., :V, :], -2, 0)
    return (branch_input.astype(residuals.dtype),
            mix[..., V:, :].astype(residuals.dtype),
            beta)


if __name__ == "__main__":
    key = jax.random.PRNGKey(0)
    k0, k1, k2, k3 = jax.random.split(key, 4)

    S, V = 4, 1                      # num_residual_streams, num_input_views
    batch, seq, dim = 2, 8, 32
    T = S + V

    residuals = jax.random.normal(k0, (batch * S, seq, dim), dtype=jnp.float32)
    # Module inits gamma / dynamic_*_fn to zeros; use small non-zero values so
    # the dynamic-alpha/beta paths are actually exercised.
    gamma = 0.1 * jax.random.normal(k1, (dim,), dtype=jnp.float32)
    dynamic_alpha_fn = 0.05 * jax.random.normal(k2, (dim, T), dtype=jnp.float32)
    dynamic_beta_fn = 0.05 * jax.random.normal(k3, (dim,), dtype=jnp.float32)
    dynamic_alpha_scale = jnp.float32(0.01)
    dynamic_beta_scale = jnp.float32(0.01)
    layer_index = 0
    init_alpha0 = jnp.zeros((S, V), jnp.float32).at[layer_index % S, :].set(1.0)
    static_alpha = jnp.concatenate([init_alpha0, jnp.eye(S, dtype=jnp.float32)], axis=1)
    static_beta = jnp.ones((S,), jnp.float32)

    params = dict(gamma=gamma,
                  dynamic_alpha_fn=dynamic_alpha_fn,
                  dynamic_alpha_scale=dynamic_alpha_scale,
                  static_alpha=static_alpha,
                  dynamic_beta_fn=dynamic_beta_fn,
                  dynamic_beta_scale=dynamic_beta_scale,
                  static_beta=static_beta,
                  num_residual_streams=S,
                  num_input_views=V)

    branch_input, residual_streams, beta = hyper_connections_width(residuals, **params)
    jax.block_until_ready((branch_input, residual_streams, beta))

    ref_bi, ref_res, ref_beta = width_connection_reference(residuals, **params)

    assert branch_input.shape == (batch, seq, dim)
    assert residual_streams.shape == (batch, seq, S, dim)
    assert beta.shape == (batch, seq, S)
    assert jnp.allclose(branch_input, ref_bi, atol=2e-5, rtol=2e-5), "branch_input mismatch"
    assert jnp.allclose(residual_streams, ref_res, atol=2e-5, rtol=2e-5), "residuals mismatch"
    assert jnp.allclose(beta, ref_beta, atol=2e-5, rtol=2e-5), "beta mismatch"

    print("KERNEL_OK")
</pallas_src>

<mosaic_0001>
module attributes {stable_mosaic.version = 11 : i64} {
  func.func @_width_connection_kernel(%arg0: i32, %arg1: i32, %arg2: memref<1x4x8x32xf32, #tpu.memory_space<vmem>>, %arg3: memref<1x1x1x32xf32, #tpu.memory_space<vmem>>, %arg4: memref<5x1x1x32xf32, #tpu.memory_space<vmem>>, %arg5: memref<5x4x1x1xf32, #tpu.memory_space<vmem>>, %arg6: memref<1x1x1x32xf32, #tpu.memory_space<vmem>>, %arg7: memref<1x4x1x1xf32, #tpu.memory_space<vmem>>, %arg8: memref<2xf32, #tpu.memory_space<smem>>, %arg9: memref<1x5x8x32xf32, #tpu.memory_space<vmem>>, %arg10: memref<1x4x8x1xf32, #tpu.memory_space<vmem>>) attributes {dimension_semantics = [#tpu.dimension_semantics<parallel>, #tpu.dimension_semantics<parallel>], iteration_bounds = array<i64: 2, 1>, scalar_prefetch = 0 : i64, scratch_operands = 0 : i64, tpu.core_type = #tpu.core_type<tc>, window_params = [{transform_indices = @transform_0, window_bounds = array<i64: 1, 4, 8, 32>}, {pipeline_mode = #tpu.pipeline_mode<synchronous>, transform_indices = @transform_1, window_bounds = array<i64: 1, 1, 1, 32>}, {pipeline_mode = #tpu.pipeline_mode<synchronous>, transform_indices = @transform_2, window_bounds = array<i64: 5, 1, 1, 32>}, {pipeline_mode = #tpu.pipeline_mode<synchronous>, transform_indices = @transform_3, window_bounds = array<i64: 5, 4, 1, 1>}, {pipeline_mode = #tpu.pipeline_mode<synchronous>, transform_indices = @transform_4, window_bounds = array<i64: 1, 1, 1, 32>}, {pipeline_mode = #tpu.pipeline_mode<synchronous>, transform_indices = @transform_5, window_bounds = array<i64: 1, 4, 1, 1>}, {transform_indices = @transform_6, window_bounds = array<i64: 2>}, {transform_indices = @transform_7, window_bounds = array<i64: 1, 5, 8, 32>}, {transform_indices = @transform_8, window_bounds = array<i64: 1, 4, 8, 1>}]} {
    %c0 = arith.constant 0 : index
    %c0_0 = arith.constant 0 : index
    %c0_1 = arith.constant 0 : index
    %c0_2 = arith.constant 0 : index
    %0 = vector.load %arg2[%c0, %c0_0, %c0_1, %c0_2] : memref<1x4x8x32xf32, #tpu.memory_space<vmem>>, vector<1x4x8x32xf32>
    %1 = arith.mulf %0, %0 : vector<1x4x8x32xf32>
    %cst = arith.constant dense<0.000000e+00> : vector<1x4x8xf32>
    %2 = vector.multi_reduction <add>, %1, %cst [3] : vector<1x4x8x32xf32> to vector<1x4x8xf32>
    %3 = vector.shape_cast %2 : vector<1x4x8xf32> to vector<1x4x8x1xf32>
    %cst_3 = arith.constant 1.000000e-24 : f32
    %4 = vector.broadcast %cst_3 : f32 to vector<1x4x8x1xf32>
    %5 = arith.maximumf %3, %4 : vector<1x4x8x1xf32>
    %6 = math.rsqrt %5 : vector<1x4x8x1xf32>
    %7 = vector.broadcast %6 : vector<1x4x8x1xf32> to vector<1x4x8x32xf32>
    %8 = arith.mulf %0, %7 : vector<1x4x8x32xf32>
    %c0_4 = arith.constant 0 : index
    %c0_5 = arith.constant 0 : index
    %c0_6 = arith.constant 0 : index
    %c0_7 = arith.constant 0 : index
    %9 = vector.load %arg3[%c0_4, %c0_5, %c0_6, %c0_7] : memref<1x1x1x32xf32, #tpu.memory_space<vmem>>, vector<1x1x1x32xf32>
    %10 = vector.broadcast %9 : vector<1x1x1x32xf32> to vector<1x4x8x32xf32>
    %11 = arith.mulf %8, %10 : vector<1x4x8x32xf32>
    %c0_8 = arith.constant 0 : index
    %12 = memref.load %arg8[%c0_8] : memref<2xf32, #tpu.memory_space<smem>>
    %c1 = arith.constant 1 : index
    %13 = memref.load %arg8[%c1] : memref<2xf32, #tpu.memory_space<smem>>
    %c0_9 = arith.constant 0 : index
    %c0_10 = arith.constant 0 : index
    %c0_11 = arith.constant 0 : index
    %c0_12 = arith.constant 0 : index
    %14 = vector.load %arg4[%c0_9, %c0_10, %c0_11, %c0_12] : memref<5x1x1x32xf32, #tpu.memory_space<vmem>>, vector<1x1x1x32xf32>
    %15 = vector.shape_cast %14 : vector<1x1x1x32xf32> to vector<1x1x32xf32>
    %16 = vector.shape_cast %15 : vector<1x1x32xf32> to vector<1x1x1x32xf32>
    %17 = vector.broadcast %16 : vector<1x1x1x32xf32> to vector<1x4x8x32xf32>
    %18 = arith.mulf %11, %17 : vector<1x4x8x32xf32>
    %cst_13 = arith.constant dense<0.000000e+00> : vector<1x4x8xf32>
    %19 = vector.multi_reduction <add>, %18, %cst_13 [3] : vector<1x4x8x32xf32> to vector<1x4x8xf32>
    %20 = vector.shape_cast %19 : vector<1x4x8xf32> to vector<1x4x8x1xf32>
    %21 = math.tanh %20 : vector<1x4x8x1xf32>
    %22 = vector.broadcast %12 : f32 to vector<1x4x8x1xf32>
    %23 = arith.mulf %21, %22 : vector<1x4x8x1xf32>
    %c0_14 = arith.constant 0 : index
    %c0_15 = arith.constant 0 : index
    %c0_16 = arith.constant 0 : index
    %c0_17 = arith.constant 0 : index
    %24 = vector.load %arg5[%c0_14, %c0_15, %c0_16, %c0_17] : memref<5x4x1x1xf32, #tpu.memory_space<vmem>>, vector<1x4x1x1xf32>
    %25 = vector.shape_cast %24 : vector<1x4x1x1xf32> to vector<4x1x1xf32>
    %26 = vector.shape_cast %25 : vector<4x1x1xf32> to vector<1x4x1x1xf32>
    %27 = vector.broadcast %26 : vector<1x4x1x1xf32> to vector<1x4x8x1xf32>
    %28 = arith.addf %23, %27 : vector<1x4x8x1xf32>
    %29 = vector.broadcast %28 : vector<1x4x8x1xf32> to vector<1x4x8x32xf32>
    %30 = arith.mulf %29, %0 : vector<1x4x8x32xf32>
    %cst_18 = arith.constant dense<0.000000e+00> : vector<1x8x32xf32>
    %31 = vector.multi_reduction <add>, %30, %cst_18 [1] : vector<1x4x8x32xf32> to vector<1x8x32xf32>
    %c0_19 = arith.constant 0 : index
    %c0_20 = arith.constant 0 : index
    %c0_21 = arith.constant 0 : index
    %c0_22 = arith.constant 0 : index
    %32 = vector.load %arg9[%c0_19, %c0_20, %c0_21, %c0_22] : memref<1x5x8x32xf32, #tpu.memory_space<vmem>>, vector<1x1x8x32xf32>
    %33 = vector.shape_cast %32 : vector<1x1x8x32xf32> to vector<1x8x32xf32>
    %34 = vector.shape_cast %31 : vector<1x8x32xf32> to vector<1x1x8x32xf32>
    tpu.vector_store %arg9[%c0_19, %c0_20, %c0_21, %c0_22], %34 {strides = array<i32>} : memref<1x5x8x32xf32, #tpu.memory_space<vmem>>, vector<1x1x8x32xf32>,
    %c1_23 = arith.constant 1 : index
    %c0_24 = arith.constant 0 : index
    %c0_25 = arith.constant 0 : index
    %c0_26 = arith.constant 0 : index
    %35 = vector.load %arg4[%c1_23, %c0_24, %c0_25, %c0_26] : memref<5x1x1x32xf32, #tpu.memory_space<vmem>>, vector<1x1x1x32xf32>
    %36 = vector.shape_cast %35 : vector<1x1x1x32xf32> to vector<1x1x32xf32>
    %37 = vector.shape_cast %36 : vector<1x1x32xf32> to vector<1x1x1x32xf32>
    %38 = vector.broadcast %37 : vector<1x1x1x32xf32> to vector<1x4x8x32xf32>
    %39 = arith.mulf %11, %38 : vector<1x4x8x32xf32>
    %cst_27 = arith.constant dense<0.000000e+00> : vector<1x4x8xf32>
    %40 = vector.multi_reduction <add>, %39, %cst_27 [3] : vector<1x4x8x32xf32> to vector<1x4x8xf32>
    %41 = vector.shape_cast %40 : vector<1x4x8xf32> to vector<1x4x8x1xf32>
    %42 = math.tanh %41 : vector<1x4x8x1xf32>
    %43 = vector.broadcast %12 : f32 to vector<1x4x8x1xf32>
    %44 = arith.mulf %42, %43 : vector<1x4x8x1xf32>
    %c1_28 = arith.constant 1 : index
    %c0_29 = arith.constant 0 : index
    %c0_30 = arith.constant 0 : index
    %c0_31 = arith.constant 0 : index
    %45 = vector.load %arg5[%c1_28, %c0_29, %c0_30, %c0_31] : memref<5x4x1x1xf32, #tpu.memory_space<vmem>>, vector<1x4x1x1xf32>
    %46 = vector.shape_cast %45 : vector<1x4x1x1xf32> to vector<4x1x1xf32>
    %47 = vector.shape_cast %46 : vector<4x1x1xf32> to vector<1x4x1x1xf32>
    %48 = vector.broadcast %47 : vector<1x4x1x1xf32> to vector<1x4x8x1xf32>
    %49 = arith.addf %44, %48 : vector<1x4x8x1xf32>
    %50 = vector.broadcast %49 : vector<1x4x8x1xf32> to vector<1x4x8x32xf32>
    %51 = arith.mulf %50, %0 : vector<1x4x8x32xf32>
    %cst_32 = arith.constant dense<0.000000e+00> : vector<1x8x32xf32>
    %52 = vector.multi_reduction <add>, %51, %cst_32 [1] : vector<1x4x8x32xf32> to vector<1x8x32xf32>
    %c0_33 = arith.constant 0 : index
    %c1_34 = arith.constant 1 : index
    %c0_35 = arith.constant 0 : index
    %c0_36 = arith.constant 0 : index
    %53 = vector.load %arg9[%c0_33, %c1_34, %c0_35, %c0_36] : memref<1x5x8x32xf32, #tpu.memory_space<vmem>>, vector<1x1x8x32xf32>
    %54 = vector.shape_cast %53 : vector<1x1x8x32xf32> to vector<1x8x32xf32>
    %55 = vector.shape_cast %52 : vector<1x8x32xf32> to vector<1x1x8x32xf32>
    tpu.vector_store %arg9[%c0_33, %c1_34, %c0_35, %c0_36], %55 {strides = array<i32>} : memref<1x5x8x32xf32, #tpu.memory_space<vmem>>, vector<1x1x8x32xf32>,
    %c2 = arith.constant 2 : index
    %c0_37 = arith.constant 0 : index
    %c0_38 = arith.constant 0 : index
    %c0_39 = arith.constant 0 : index
    %56 = vector.load %arg4[%c2, %c0_37, %c0_38, %c0_39] : memref<5x1x1x32xf32, #tpu.memory_space<vmem>>, vector<1x1x1x32xf32>
    %57 = vector.shape_cast %56 : vector<1x1x1x32xf32> to vector<1x1x32xf32>
    %58 = vector.shape_cast %57 : vector<1x1x32xf32> to vector<1x1x1x32xf32>
    %59 = vector.broadcast %58 : vector<1x1x1x32xf32> to vector<1x4x8x32xf32>
    %60 = arith.mulf %11, %59 : vector<1x4x8x32xf32>
    %cst_40 = arith.constant dense<0.000000e+00> : vector<1x4x8xf32>
    %61 = vector.multi_reduction <add>, %60, %cst_40 [3] : vector<1x4x8x32xf32> to vector<1x4x8xf32>
    %62 = vector.shape_cast %61 : vector<1x4x8xf32> to vector<1x4x8x1xf32>
    %63 = math.tanh %62 : vector<1x4x8x1xf32>
    %64 = vector.broadcast %12 : f32 to vector<1x4x8x1xf32>
    %65 = arith.mulf %63, %64 : vector<1x4x8x1xf32>
    %c2_41 = arith.constant 2 : index
    %c0_42 = arith.constant 0 : index
    %c0_43 = arith.constant 0 : index
    %c0_44 = arith.constant 0 : index
    %66 = vector.load %arg5[%c2_41, %c0_42, %c0_43, %c0_44] : memref<5x4x1x1xf32, #tpu.memory_space<vmem>>, vector<1x4x1x1xf32>
    %67 = vector.shape_cast %66 : vector<1x4x1x1xf32> to vector<4x1x1xf32>
    %68 = vector.shape_cast %67 : vector<4x1x1xf32> to vector<1x4x1x1xf32>
    %69 = vector.broadcast %68 : vector<1x4x1x1xf32> to vector<1x4x8x1xf32>
    %70 = arith.addf %65, %69 : vector<1x4x8x1xf32>
    %71 = vector.broadcast %70 : vector<1x4x8x1xf32> to vector<1x4x8x32xf32>
    %72 = arith.mulf %71, %0 : vector<1x4x8x32xf32>
    %cst_45 = arith.constant dense<0.000000e+00> : vector<1x8x32xf32>
    %73 = vector.multi_reduction <add>, %72, %cst_45 [1] : vector<1x4x8x32xf32> to vector<1x8x32xf32>
    %c0_46 = arith.constant 0 : index
    %c2_47 = arith.constant 2 : index
    %c0_48 = arith.constant 0 : index
    %c0_49 = arith.constant 0 : index
    %74 = vector.load %arg9[%c0_46, %c2_47, %c0_48, %c0_49] : memref<1x5x8x32xf32, #tpu.memory_space<vmem>>, vector<1x1x8x32xf32>
    %75 = vector.shape_cast %74 : vector<1x1x8x32xf32> to vector<1x8x32xf32>
    %76 = vector.shape_cast %73 : vector<1x8x32xf32> to vector<1x1x8x32xf32>
    tpu.vector_store %arg9[%c0_46, %c2_47, %c0_48, %c0_49], %76 {strides = array<i32>} : memref<1x5x8x32xf32, #tpu.memory_space<vmem>>, vector<1x1x8x32xf32>,
    %c3 = arith.constant 3 : index
    %c0_50 = arith.constant 0 : index
    %c0_51 = arith.constant 0 : index
    %c0_52 = arith.constant 0 : index
    %77 = vector.load %arg4[%c3, %c0_50, %c0_51, %c0_52] : memref<5x1x1x32xf32, #tpu.memory_space<vmem>>, vector<1x1x1x32xf32>
    %78 = vector.shape_cast %77 : vector<1x1x1x32xf32> to vector<1x1x32xf32>
    %79 = vector.shape_cast %78 : vector<1x1x32xf32> to vector<1x1x1x32xf32>
    %80 = vector.broadcast %79 : vector<1x1x1x32xf32> to vector<1x4x8x32xf32>
    %81 = arith.mulf %11, %80 : vector<1x4x8x32xf32>
    %cst_53 = arith.constant dense<0.000000e+00> : vector<1x4x8xf32>
    %82 = vector.multi_reduction <add>, %81, %cst_53 [3] : vector<1x4x8x32xf32> to vector<1x4x8xf32>
    %83 = vector.shape_cast %82 : vector<1x4x8xf32> to vector<1x4x8x1xf32>
    %84 = math.tanh %83 : vector<1x4x8x1xf32>
    %85 = vector.broadcast %12 : f32 to vector<1x4x8x1xf32>
    %86 = arith.mulf %84, %85 : vector<1x4x8x1xf32>
    %c3_54 = arith.constant 3 : index
    %c0_55 = arith.constant 0 : index
    %c0_56 = arith.constant 0 : index
    %c0_57 = arith.constant 0 : index
    %87 = vector.load %arg5[%c3_54, %c0_55, %c0_56, %c0_57] : memref<5x4x1x1xf32, #tpu.memory_space<vmem>>, vector<1x4x1x1xf32>
    %88 = vector.shape_cast %87 : vector<1x4x1x1xf32> to vector<4x1x1xf32>
    %89 = vector.shape_cast %88 : vector<4x1x1xf32> to vector<1x4x1x1xf32>
    %90 = vector.broadcast %89 : vector<1x4x1x1xf32> to vector<1x4x8x1xf32>
    %91 = arith.addf %86, %90 : vector<1x4x8x1xf32>
    %92 = vector.broadcast %91 : vector<1x4x8x1xf32> to vector<1x4x8x32xf32>
    %93 = arith.mulf %92, %0 : vector<1x4x8x32xf32>
    %cst_58 = arith.constant dense<0.000000e+00> : vector<1x8x32xf32>
    %94 = vector.multi_reduction <add>, %93, %cst_58 [1] : vector<1x4x8x32xf32> to vector<1x8x32xf32>
    %c0_59 = arith.constant 0 : index
    %c3_60 = arith.constant 3 : index
    %c0_61 = arith.constant 0 : index
    %c0_62 = arith.constant 0 : index
    %95 = vector.load %arg9[%c0_59, %c3_60, %c0_61, %c0_62] : memref<1x5x8x32xf32, #tpu.memory_space<vmem>>, vector<1x1x8x32xf32>
    %96 = vector.shape_cast %95 : vector<1x1x8x32xf32> to vector<1x8x32xf32>
    %97 = vector.shape_cast %94 : vector<1x8x32xf32> to vector<1x1x8x32xf32>
    tpu.vector_store %arg9[%c0_59, %c3_60, %c0_61, %c0_62], %97 {strides = array<i32>} : memref<1x5x8x32xf32, #tpu.memory_space<vmem>>, vector<1x1x8x32xf32>,
    %c4 = arith.constant 4 : index
    %c0_63 = arith.constant 0 : index
    %c0_64 = arith.constant 0 : index
    %c0_65 = arith.constant 0 : index
    %98 = vector.load %arg4[%c4, %c0_63, %c0_64, %c0_65] : memref<5x1x1x32xf32, #tpu.memory_space<vmem>>, vector<1x1x1x32xf32>
    %99 = vector.shape_cast %98 : vector<1x1x1x32xf32> to vector<1x1x32xf32>
    %100 = vector.shape_cast %99 : vector<1x1x32xf32> to vector<1x1x1x32xf32>
    %101 = vector.broadcast %100 : vector<1x1x1x32xf32> to vector<1x4x8x32xf32>
    %102 = arith.mulf %11, %101 : vector<1x4x8x32xf32>
    %cst_66 = arith.constant dense<0.000000e+00> : vector<1x4x8xf32>
    %103 = vector.multi_reduction <add>, %102, %cst_66 [3] : vector<1x4x8x32xf32> to vector<1x4x8xf32>
    %104 = vector.shape_cast %103 : vector<1x4x8xf32> to vector<1x4x8x1xf32>
    %105 = math.tanh %104 : vector<1x4x8x1xf32>
    %106 = vector.broadcast %12 : f32 to vector<1x4x8x1xf32>
    %107 = arith.mulf %105, %106 : vector<1x4x8x1xf32>
    %c4_67 = arith.constant 4 : index
    %c0_68 = arith.constant 0 : index
    %c0_69 = arith.constant 0 : index
    %c0_70 = arith.constant 0 : index
    %108 = vector.load %arg5[%c4_67, %c0_68, %c0_69, %c0_70] : memref<5x4x1x1xf32, #tpu.memory_space<vmem>>, vector<1x4x1x1xf32>
    %109 = vector.shape_cast %108 : vector<1x4x1x1xf32> to vector<4x1x1xf32>
    %110 = vector.shape_cast %109 : vector<4x1x1xf32> to vector<1x4x1x1xf32>
    %111 = vector.broadcast %110 : vector<1x4x1x1xf32> to vector<1x4x8x1xf32>
    %112 = arith.addf %107, %111 : vector<1x4x8x1xf32>
    %113 = vector.broadcast %112 : vector<1x4x8x1xf32> to vector<1x4x8x32xf32>
    %114 = arith.mulf %113, %0 : vector<1x4x8x32xf32>
    %cst_71 = arith.constant dense<0.000000e+00> : vector<1x8x32xf32>
    %115 = vector.multi_reduction <add>, %114, %cst_71 [1] : vector<1x4x8x32xf32> to vector<1x8x32xf32>
    %c0_72 = arith.constant 0 : index
    %c4_73 = arith.constant 4 : index
    %c0_74 = arith.constant 0 : index
    %c0_75 = arith.constant 0 : index
    %116 = vector.load %arg9[%c0_72, %c4_73, %c0_74, %c0_75] : memref<1x5x8x32xf32, #tpu.memory_space<vmem>>, vector<1x1x8x32xf32>
    %117 = vector.shape_cast %116 : vector<1x1x8x32xf32> to vector<1x8x32xf32>
    %118 = vector.shape_cast %115 : vector<1x8x32xf32> to vector<1x1x8x32xf32>
    tpu.vector_store %arg9[%c0_72, %c4_73, %c0_74, %c0_75], %118 {strides = array<i32>} : memref<1x5x8x32xf32, #tpu.memory_space<vmem>>, vector<1x1x8x32xf32>,
    %c0_76 = arith.constant 0 : index
    %c0_77 = arith.constant 0 : index
    %c0_78 = arith.constant 0 : index
    %c0_79 = arith.constant 0 : index
    %119 = vector.load %arg6[%c0_76, %c0_77, %c0_78, %c0_79] : memref<1x1x1x32xf32, #tpu.memory_space<vmem>>, vector<1x1x1x32xf32>
    %120 = vector.broadcast %119 : vector<1x1x1x32xf32> to vector<1x4x8x32xf32>
    %121 = arith.mulf %11, %120 : vector<1x4x8x32xf32>
    %cst_80 = arith.constant dense<0.000000e+00> : vector<1x4x8xf32>
    %122 = vector.multi_reduction <add>, %121, %cst_80 [3] : vector<1x4x8x32xf32> to vector<1x4x8xf32>
    %123 = vector.shape_cast %122 : vector<1x4x8xf32> to vector<1x4x8x1xf32>
    %124 = math.tanh %123 : vector<1x4x8x1xf32>
    %125 = vector.broadcast %13 : f32 to vector<1x4x8x1xf32>
    %126 = arith.mulf %124, %125 : vector<1x4x8x1xf32>
    %c0_81 = arith.constant 0 : index
    %c0_82 = arith.constant 0 : index
    %c0_83 = arith.constant 0 : index
    %c0_84 = arith.constant 0 : index
    %127 = vector.load %arg7[%c0_81, %c0_82, %c0_83, %c0_84] : memref<1x4x1x1xf32, #tpu.memory_space<vmem>>, vector<1x4x1x1xf32>
    %128 = vector.broadcast %127 : vector<1x4x1x1xf32> to vector<1x4x8x1xf32>
    %129 = arith.addf %126, %128 : vector<1x4x8x1xf32>
    %c0_85 = arith.constant 0 : index
    %c0_86 = arith.constant 0 : index
    %c0_87 = arith.constant 0 : index
    %c0_88 = arith.constant 0 : index
    %130 = vector.load %arg10[%c0_85, %c0_86, %c0_87, %c0_88] : memref<1x4x8x1xf32, #tpu.memory_space<vmem>>, vector<1x4x8x1xf32>
    tpu.vector_store %arg10[%c0_85, %c0_86, %c0_87, %c0_88], %129 {strides = array<i32>} : memref<1x4x8x1xf32, #tpu.memory_space<vmem>>, vector<1x4x8x1xf32>,
    return
  }
  func.func @transform_0(%arg0: i32, %arg1: i32) -> (i32, i32, i32, i32) {
    %c0_i32 = arith.constant 0 : i32
    %c0_i32_0 = arith.constant 0 : i32
    %c0_i32_1 = arith.constant 0 : i32
    return %arg0, %c0_i32, %arg1, %c0_i32_0 : i32, i32, i32, i32
  }
  func.func @transform_1(%arg0: i32, %arg1: i32) -> (i32, i32, i32, i32) {
    %c0_i32 = arith.constant 0 : i32
    %c0_i32_0 = arith.constant 0 : i32
    %c0_i32_1 = arith.constant 0 : i32
    %c0_i32_2 = arith.constant 0 : i32
    %c0_i32_3 = arith.constant 0 : i32
    return %c0_i32, %c0_i32_0, %c0_i32_1, %c0_i32_2 : i32, i32, i32, i32
  }
  func.func @transform_2(%arg0: i32, %arg1: i32) -> (i32, i32, i32, i32) {
    %c0_i32 = arith.constant 0 : i32
    %c0_i32_0 = arith.constant 0 : i32
    %c0_i32_1 = arith.constant 0 : i32
    %c0_i32_2 = arith.constant 0 : i32
    %c0_i32_3 = arith.constant 0 : i32
    return %c0_i32, %c0_i32_0, %c0_i32_1, %c0_i32_2 : i32, i32, i32, i32
  }
  func.func @transform_3(%arg0: i32, %arg1: i32) -> (i32, i32, i32, i32) {
    %c0_i32 = arith.constant 0 : i32
    %c0_i32_0 = arith.constant 0 : i32
    %c0_i32_1 = arith.constant 0 : i32
    %c0_i32_2 = arith.constant 0 : i32
    %c0_i32_3 = arith.constant 0 : i32
    return %c0_i32, %c0_i32_0, %c0_i32_1, %c0_i32_2 : i32, i32, i32, i32
  }
  func.func @transform_4(%arg0: i32, %arg1: i32) -> (i32, i32, i32, i32) {
    %c0_i32 = arith.constant 0 : i32
    %c0_i32_0 = arith.constant 0 : i32
    %c0_i32_1 = arith.constant 0 : i32
    %c0_i32_2 = arith.constant 0 : i32
    %c0_i32_3 = arith.constant 0 : i32
    return %c0_i32, %c0_i32_0, %c0_i32_1, %c0_i32_2 : i32, i32, i32, i32
  }
  func.func @transform_5(%arg0: i32, %arg1: i32) -> (i32, i32, i32, i32) {
    %c0_i32 = arith.constant 0 : i32
    %c0_i32_0 = arith.constant 0 : i32
    %c0_i32_1 = arith.constant 0 : i32
    %c0_i32_2 = arith.constant 0 : i32
    %c0_i32_3 = arith.constant 0 : i32
    return %c0_i32, %c0_i32_0, %c0_i32_1, %c0_i32_2 : i32, i32, i32, i32
  }
  func.func @transform_6(%arg0: i32, %arg1: i32) -> i32 {
    %c0_i32 = arith.constant 0 : i32
    %c0_i32_0 = arith.constant 0 : i32
    return %c0_i32 : i32
  }
  func.func @transform_7(%arg0: i32, %arg1: i32) -> (i32, i32, i32, i32) {
    %c0_i32 = arith.constant 0 : i32
    %c0_i32_0 = arith.constant 0 : i32
    %c0_i32_1 = arith.constant 0 : i32
    return %arg0, %c0_i32, %arg1, %c0_i32_0 : i32, i32, i32, i32
  }
  func.func @transform_8(%arg0: i32, %arg1: i32) -> (i32, i32, i32, i32) {
    %c0_i32 = arith.constant 0 : i32
    %c0_i32_0 = arith.constant 0 : i32
    %c0_i32_1 = arith.constant 0 : i32
    return %arg0, %c0_i32, %arg1, %c0_i32_0 : i32, i32, i32, i32
  }
}

</mosaic_0001>

<llo_original>
// kernel: tpu_custom_call.1
$region0: #{tpu_custom_call.1}
  #allocation0 [shape = 'u32[]', space=smem, size = 0x4, offset = 0x4, fixed_abs, tag = 'smem constant byte address 0x4 - core index']
  #allocation1 [shape = 'u32[144,128]{1,0:T(1,128)}', space=vmem, size = 0x12000, scoped, tag = 'internal scratch']
  %s0 = inlined_call_operand.hbm [shape: f32[2,4,8,32], index: 0, kind: input, shape index: {}]
  %s1 = inlined_call_operand.vmem [shape: f32[1,1,1,32], index: 1, kind: input, shape index: {}]
  %s2 = inlined_call_operand.vmem [shape: f32[5,1,1,32], index: 2, kind: input, shape index: {}]
  %s3 = inlined_call_operand.vmem [shape: f32[5,4,1,1], index: 3, kind: input, shape index: {}]
  %s4 = inlined_call_operand.vmem [shape: f32[1,1,1,32], index: 4, kind: input, shape index: {}]
  %s5 = inlined_call_operand.vmem [shape: f32[1,4,1,1], index: 5, kind: input, shape index: {}]
  %s6 = inlined_call_operand.vmem [shape: f32[2], index: 6, kind: input, shape index: {}]
  %s7 = inlined_call_operand.hbm [shape: f32[2,5,8,32], index: 7, kind: output, shape index: {0}]
  %s8 = inlined_call_operand.vmem [shape: f32[2,4,8,1], index: 8, kind: output, shape index: {1}]
  %9 = xla_tuple %s7, %s8
  %s10 = sld [smem:[#allocation0]]
  $region77: #{tpu_custom_call.1} parent=0
    _
  %s12 = ssub.s32 1, %s10
  %s13 = scalar_select 0, %s12, %s10
  $region1: #{tpu_custom_call.1} parent=0
    #allocation2 [shape = 'u8[32768]{0}', space=vmem, size = 0x8000, scoped, tag = 'input window, operand 0']
    #allocation3 [shape = 's32[2]{0}', space=sflag, size = 0x8, scoped, tag = 'scoped memory for tpu_custom_call.1']
    #allocation4 [shape = 's32[2]{0}', space=sflag, size = 0x8, scoped, tag = 'scoped memory for tpu_custom_call.1']
    #allocation5 [shape = 's32[2]{0}', space=sflag, size = 0x8, scoped, tag = 'scoped memory for tpu_custom_call.1']
    #allocation6 [shape = 'u8[512]{0}', space=smem, size = 0x200, scoped, tag = 'input window, operand 6, single buffered']
    #allocation7 [shape = 'u8[40960]{0}', space=vmem, size = 0xa000, scoped, tag = 'output window, operand 0']
    %14 = vsyncpa [#allocation3], 0
    %s15 = scalar_lea.sflag [#allocation3], 1
    %16 = vsyncpa %s15, 0
    %17 = vsyncpa [#allocation5], 0
    %18 = vsyncpa [#allocation4], 0
    %s19 = scalar_lea.sflag [#allocation4], 1
    %20 = vsyncpa %s19, 0
    loop: start=0, step=1, limit=4
    $region2: #{tpu_custom_call.1} parent=1 // loop_pre_header
      _
    $region3: #{tpu_custom_call.1} parent=1 // loop_header
      %s22 = sphi 0, %s26
      %p23 = scmp.ge.s32.totalorder %s22, 4
      %s29 = sphi 0, %s41
      %s30 = sphi 0, %s37
      %s31 = sphi 0, %s29
      %s32 = sphi 0, %s30
      %s33 = sphi 0, %s31
      %s34 = sphi 0, %s32
      %s46 = sphi 0, %s48
      %s49 = sphi 0, %s46
      %s50 = sphi 0, %s49
      %s66 = sphi 0, %s50
      %s70 = sphi 0, %s70
      %s72 = sphi 0, %s70
      %s73 = sphi 0, %s72
      %s87 = sphi 0, %s73
      %s91 = sphi 0, %s91
      %s93 = sphi 0, %s91
      %s94 = sphi 0, %s93
      %s108 = sphi 0, %s94
      %s112 = sphi 0, %s112
      %s114 = sphi 0, %s112
      %s115 = sphi 0, %s114
      %s129 = sphi 0, %s115
      %s133 = sphi 0, %s133
      %s135 = sphi 0, %s133
      %s136 = sphi 0, %s135
      %s150 = sphi 0, %s136
      %s154 = sphi 0, %s154
      %s156 = sphi 0, %s154
      %s157 = sphi 0, %s156
      %s171 = sphi 0, %s157
      %s175 = sphi 0, %s175
      %s177 = sphi 0, %s175
      %s178 = sphi 0, %s177
      %s192 = sphi 0, %s178
      %s200 = sphi 0, %s202
      %s203 = sphi 0, %s200
      %s204 = sphi 0, %s203
      %s220 = sphi 0, %s204
      %s228 = sphi 0, %s230
      %s231 = sphi 0, %s228
      %s232 = sphi 0, %s231
      %s248 = sphi 0, %s232
    $region4: #{tpu_custom_call.1} parent=1 // loop_header_branch
      %25 = sbr.rel (%p23) target = $region8
    $region5: #{tpu_custom_call.1} parent=1 // loop_body
      %s27 = ssub.s32 %s22, 1
      %s28 = ssub.s32 %s22, 2
      %s35 = sadd.s32 1, %s30
      %p36 = scmp.ge.s32.totalorder %s35, 1
      %s37 = scalar_select %p36, 0, %s35
      %s38 = sadd.s32 1, %s29
      %s39 = scalar_select %p36, %s38, %s29
      %p40 = scmp.ge.s32.totalorder %s39, 2
      %s41 = scalar_select %p40, 0, %s39
      %s42 = ssub.s32 %s29, %s41
      %s43 = ssub.s32 %s30, %s37
      %s44 = sor.u32 %s42, %s43
      %p45 = scmp.eq.s32.totalorder %s44, 0
      %s47 = sadd.s32 %s46, 1
      %s48 = scalar_select %p45, %s46, %s47
      %p51 = pneg %p45
      %p52 = scmp.eq.s32.totalorder %s22, 1
      %p53 = por %p51, %p52
      %p54 = scmp.ne.s32.totalorder %s46, %s49
      %p55 = scmp.eq.s32.totalorder %s22, 0
      %p56 = por %p54, %p55
      %p57 = scmp.ne.s32.totalorder %s46, %s49
      %p58 = scmp.eq.s32.totalorder %s27, 1
      %p59 = por %p57, %p58
      %p60 = scmp.ne.s32.totalorder %s49, %s50
      %p61 = scmp.eq.s32.totalorder %s27, 0
      %p62 = por %p60, %p61
      %p63 = scmp.ne.s32.totalorder %s49, %s50
      %p64 = scmp.eq.s32.totalorder %s28, 1
      %p65 = por %p63, %p64
      %p67 = scmp.ne.s32.totalorder %s50, %s66
      %p68 = scmp.eq.s32.totalorder %s28, 0
      %p69 = por %p67, %p68
      %s71 = sadd.s32 %s70, 1
      %p74 = scmp.eq.s32.totalorder %s22, 1
      %p75 = scmp.ne.s32.totalorder %s70, %s72
      %p76 = scmp.eq.s32.totalorder %s22, 0
      %p77 = por %p75, %p76
      %p78 = scmp.ne.s32.totalorder %s70, %s72
      %p79 = scmp.eq.s32.totalorder %s27, 1
      %p80 = por %p78, %p79
      %p81 = scmp.ne.s32.totalorder %s72, %s73
      %p82 = scmp.eq.s32.totalorder %s27, 0
      %p83 = por %p81, %p82
      %p84 = scmp.ne.s32.totalorder %s72, %s73
      %p85 = scmp.eq.s32.totalorder %s28, 1
      %p86 = por %p84, %p85
      %p88 = scmp.ne.s32.totalorder %s73, %s87
      %p89 = scmp.eq.s32.totalorder %s28, 0
      %p90 = por %p88, %p89
      %s92 = sadd.s32 %s91, 1
      %p95 = scmp.eq.s32.totalorder %s22, 1
      %p96 = scmp.ne.s32.totalorder %s91, %s93
      %p97 = scmp.eq.s32.totalorder %s22, 0
      %p98 = por %p96, %p97
      %p99 = scmp.ne.s32.totalorder %s91, %s93
      %p100 = scmp.eq.s32.totalorder %s27, 1
      %p101 = por %p99, %p100
      %p102 = scmp.ne.s32.totalorder %s93, %s94
      %p103 = scmp.eq.s32.totalorder %s27, 0
      %p104 = por %p102, %p103
      %p105 = scmp.ne.s32.totalorder %s93, %s94
      %p106 = scmp.eq.s32.totalorder %s28, 1
      %p107 = por %p105, %p106
      %p109 = scmp.ne.s32.totalorder %s94, %s108
      %p110 = scmp.eq.s32.totalorder %s28, 0
      %p111 = por %p109, %p110
      %s113 = sadd.s32 %s112, 1
      %p116 = scmp.eq.s32.totalorder %s22, 1
      %p117 = scmp.ne.s32.totalorder %s112, %s114
      %p118 = scmp.eq.s32.totalorder %s22, 0
      %p119 = por %p117, %p118
      %p120 = scmp.ne.s32.totalorder %s112, %s114
      %p121 = scmp.eq.s32.totalorder %s27, 1
      %p122 = por %p120, %p121
      %p123 = scmp.ne.s32.totalorder %s114, %s115
      %p124 = scmp.eq.s32.totalorder %s27, 0
      %p125 = por %p123, %p124
      %p126 = scmp.ne.s32.totalorder %s114, %s115
      %p127 = scmp.eq.s32.totalorder %s28, 1
      %p128 = por %p126, %p127
      %p130 = scmp.ne.s32.totalorder %s115, %s129
      %p131 = scmp.eq.s32.totalorder %s28, 0
      %p132 = por %p130, %p131
      %s134 = sadd.s32 %s133, 1
      %p137 = scmp.eq.s32.totalorder %s22, 1
      %p138 = scmp.ne.s32.totalorder %s133, %s135
      %p139 = scmp.eq.s32.totalorder %s22, 0
      %p140 = por %p138, %p139
      %p141 = scmp.ne.s32.totalorder %s133, %s135
      %p142 = scmp.eq.s32.totalorder %s27, 1
      %p143 = por %p141, %p142
      %p144 = scmp.ne.s32.totalorder %s135, %s136
      %p145 = scmp.eq.s32.totalorder %s27, 0
      %p146 = por %p144, %p145
      %p147 = scmp.ne.s32.totalorder %s135, %s136
      %p148 = scmp.eq.s32.totalorder %s28, 1
      %p149 = por %p147, %p148
      %p151 = scmp.ne.s32.totalorder %s136, %s150
      %p152 = scmp.eq.s32.totalorder %s28, 0
      %p153 = por %p151, %p152
      %s155 = sadd.s32 %s154, 1
      %p158 = scmp.eq.s32.totalorder %s22, 1
      %p159 = scmp.ne.s32.totalorder %s154, %s156
      %p160 = scmp.eq.s32.totalorder %s22, 0
      %p161 = por %p159, %p160
      %p162 = scmp.ne.s32.totalorder %s154, %s156
      %p163 = scmp.eq.s32.totalorder %s27, 1
      %p164 = por %p162, %p163
      %p165 = scmp.ne.s32.totalorder %s156, %s157
      %p166 = scmp.eq.s32.totalorder %s27, 0
      %p167 = por %p165, %p166
      %p168 = scmp.ne.s32.totalorder %s156, %s157
      %p169 = scmp.eq.s32.totalorder %s28, 1
      %p170 = por %p168, %p169
      %p172 = scmp.ne.s32.totalorder %s157, %s171
      %p173 = scmp.eq.s32.totalorder %s28, 0
      %p174 = por %p172, %p173
      %s176 = sadd.s32 %s175, 1
      %p179 = scmp.eq.s32.totalorder %s22, 1
      %p180 = scmp.ne.s32.totalorder %s175, %s177
      %p181 = scmp.eq.s32.totalorder %s22, 0
      %p182 = por %p180, %p181
      %p183 = scmp.ne.s32.totalorder %s175, %s177
      %p184 = scmp.eq.s32.totalorder %s27, 1
      %p185 = por %p183, %p184
      %p186 = scmp.ne.s32.totalorder %s177, %s178
      %p187 = scmp.eq.s32.totalorder %s27, 0
      %p188 = por %p186, %p187
      %p189 = scmp.ne.s32.totalorder %s177, %s178
      %p190 = scmp.eq.s32.totalorder %s28, 1
      %p191 = por %p189, %p190
      %p193 = scmp.ne.s32.totalorder %s178, %s192
      %p194 = scmp.eq.s32.totalorder %s28, 0
      %p195 = por %p193, %p194
      %s196 = ssub.s32 %s29, %s41
      %s197 = ssub.s32 %s30, %s37
      %s198 = sor.u32 %s196, %s197
      %p199 = scmp.eq.s32.totalorder %s198, 0
      %s201 = sadd.s32 %s200, 1
      %s202 = scalar_select %p199, %s200, %s201
      %p205 = pneg %p199
      %p206 = scmp.eq.s32.totalorder %s22, 1
      %p207 = por %p205, %p206
      %p208 = scmp.ne.s32.totalorder %s200, %s203
      %p209 = scmp.eq.s32.totalorder %s22, 0
      %p210 = por %p208, %p209
      %p211 = scmp.ne.s32.totalorder %s200, %s203
      %p212 = scmp.eq.s32.totalorder %s27, 1
      %p213 = por %p211, %p212
      %p214 = scmp.ne.s32.totalorder %s203, %s204
      %p215 = scmp.eq.s32.totalorder %s27, 0
      %p216 = por %p214, %p215
      %p217 = scmp.ne.s32.totalorder %s203, %s204
      %p218 = scmp.eq.s32.totalorder %s28, 1
      %p219 = por %p217, %p218
      %p221 = scmp.ne.s32.totalorder %s204, %s220
      %p222 = scmp.eq.s32.totalorder %s28, 0
      %p223 = por %p221, %p222
      %s224 = ssub.s32 %s29, %s41
      %s225 = ssub.s32 %s30, %s37
      %s226 = sor.u32 %s224, %s225
      %p227 = scmp.eq.s32.totalorder %s226, 0
      %s229 = sadd.s32 %s228, 1
      %s230 = scalar_select %p227, %s228, %s229
      %p233 = pneg %p227
      %p234 = scmp.eq.s32.totalorder %s22, 1
      %p235 = por %p233, %p234
      %p236 = scmp.ne.s32.totalorder %s228, %s231
      %p237 = scmp.eq.s32.totalorder %s22, 0
      %p238 = por %p236, %p237
      %p239 = scmp.ne.s32.totalorder %s228, %s231
      %p240 = scmp.eq.s32.totalorder %s27, 1
      %p241 = por %p239, %p240
      %p242 = scmp.ne.s32.totalorder %s231, %s232
      %p243 = scmp.eq.s32.totalorder %s27, 0
      %p244 = por %p242, %p243
      %p245 = scmp.ne.s32.totalorder %s231, %s232
      %p246 = scmp.eq.s32.totalorder %s28, 1
      %p247 = por %p245, %p246
      %p249 = scmp.ne.s32.totalorder %s232, %s248
      %p250 = scmp.eq.s32.totalorder %s28, 0
      %p251 = por %p249, %p250
      %p252 = scmp.le.s32.totalorder 1, %s22
      %p253 = scmp.lt.s32.totalorder %s22, 3
      %p254 = pnand %p252, %p253
      %p255 = pneg %p254
      // Predicated region
      $region9: #{tpu_custom_call.1} parent=5 // pred_check
        _
      $region10: #{tpu_custom_call.1} parent=5 // pred_check_branch
        %257 = sbr.rel (%p254) target = $region12
      $region11: #{tpu_custom_call.1} parent=5 // pred_region
        %s258 = ssub.s32 %s22, 1
        // Predicated region
        $region13: #{tpu_custom_call.1} parent=11 // pred_check
          %p259 = pneg %p83
        $region14: #{tpu_custom_call.1} parent=11 // pred_check_branch
          %261 = sbr.rel (%p259) target = $region16
        $region15: #{tpu_custom_call.1} parent=11 // pred_region
          _
        $region16: #{tpu_custom_call.1} parent=11 // pred_fallthru
          _
        // Predicated region
        $region17: #{tpu_custom_call.1} parent=11 // pred_check
          %p262 = pneg %p104
        $region18: #{tpu_custom_call.1} parent=11 // pred_check_branch
          %264 = sbr.rel (%p262) target = $region20
        $region19: #{tpu_custom_call.1} parent=11 // pred_region
          _
        $region20: #{tpu_custom_call.1} parent=11 // pred_fallthru
          _
        // Predicated region
        $region21: #{tpu_custom_call.1} parent=11 // pred_check
          %p265 = pneg %p125
        $region22: #{tpu_custom_call.1} parent=11 // pred_check_branch
          %267 = sbr.rel (%p265) target = $region24
        $region23: #{tpu_custom_call.1} parent=11 // pred_region
          _
        $region24: #{tpu_custom_call.1} parent=11 // pred_fallthru
          _
        // Predicated region
        $region25: #{tpu_custom_call.1} parent=11 // pred_check
          %p268 = pneg %p146
        $region26: #{tpu_custom_call.1} parent=11 // pred_check_branch
          %270 = sbr.rel (%p268) target = $region28
        $region27: #{tpu_custom_call.1} parent=11 // pred_region
          _
        $region28: #{tpu_custom_call.1} parent=11 // pred_fallthru
          _
        // Predicated region
        $region29: #{tpu_custom_call.1} parent=11 // pred_check
          %p271 = pneg %p167
        $region30: #{tpu_custom_call.1} parent=11 // pred_check_branch
          %273 = sbr.rel (%p271) target = $region32
        $region31: #{tpu_custom_call.1} parent=11 // pred_region
          _
        $region32: #{tpu_custom_call.1} parent=11 // pred_fallthru
          _
        // Predicated region
        $region33: #{tpu_custom_call.1} parent=11 // pred_check
          %p274 = pneg %p188
        $region34: #{tpu_custom_call.1} parent=11 // pred_check_branch
          %276 = sbr.rel (%p274) target = $region36
        $region35: #{tpu_custom_call.1} parent=11 // pred_region
          %s278 = ssub.s32 16, 16
          %279 = vsyncadd [#allocation5], %s278
          %s281 = sshll.u32 %s6, 4
          %s282 = int_to_ptr.vmem [resolvable:$true] %s281
          %284 = dma.vmem_to_smem %s282, 16, [#allocation6], [#allocation5]
        $region36: #{tpu_custom_call.1} parent=11 // pred_fallthru
          _
      $region12: #{tpu_custom_call.1} parent=5 // pred_fallthru
        _
      %p285 = scmp.lt.s32.totalorder %s22, 2
      // Predicated region
      $region37: #{tpu_custom_call.1} parent=5 // pred_check
        %p286 = pneg %p285
      $region38: #{tpu_custom_call.1} parent=5 // pred_check_branch
        %288 = sbr.rel (%p286) target = $region40
      $region39: #{tpu_custom_call.1} parent=5 // pred_region
        // Predicated region
        $region41: #{tpu_custom_call.1} parent=39 // pred_check
          %p289 = pneg %p56
        $region42: #{tpu_custom_call.1} parent=39 // pred_check_branch
          %291 = sbr.rel (%p289) target = $region44
        $region43: #{tpu_custom_call.1} parent=39 // pred_region
          %s292 = sand.u32 %s46, 1
          %s293 = scalar_lea.sflag [#allocation3], %s292
          %s294 = sand.u32 %s46, 1
          %s295 = smul.addr %s294, 32
          %s296 = scalar_lea.vmem [#allocation2], %s295
          %s298 = ssub.s32 512, 512
          %299 = vsyncadd %s293, %s298
          %s300 = smul.addr %s29, 4
          %s301 = sadd.s32 %s30, %s300
          %s302 = smul.addr %s301, 128
          %s303 = scalar_lea.hbm %s0, %s302
          %s304 = sshll.u32 %s296, 4
          %s305 = int_to_ptr.vmem [resolvable:$true] %s304
          %310 = dma.hbm_to_vmem [thread:$0]  %s303, 512, %s305, %s293, 128, 128, 8
        $region44: #{tpu_custom_call.1} parent=39 // pred_fallthru
          _
      $region40: #{tpu_custom_call.1} parent=5 // pred_fallthru
        _
      %p311 = scmp.le.s32.totalorder 1, %s22
      %p312 = scmp.lt.s32.totalorder %s22, 3
      %p313 = pnand %p311, %p312
      %p314 = pneg %p313
      // Predicated region
      $region45: #{tpu_custom_call.1} parent=5 // pred_check
        _
      $region46: #{tpu_custom_call.1} parent=5 // pred_check_branch
        %316 = sbr.rel (%p313) target = $region48
      $region47: #{tpu_custom_call.1} parent=5 // pred_region
        %s317 = ssub.s32 %s22, 1
        %s318 = sand.u32 %s49, 1
        %s319 = scalar_lea.sflag [#allocation3], %s318
        %s320 = sand.u32 %s49, 1
        %s321 = smul.addr %s320, 32
        %s322 = scalar_lea.vmem [#allocation2], %s321
        // Predicated region
        $region49: #{tpu_custom_call.1} parent=47 // pred_check
          %p323 = pneg %p62
        $region50: #{tpu_custom_call.1} parent=47 // pred_check_branch
          %325 = sbr.rel (%p323) target = $region52
        $region51: #{tpu_custom_call.1} parent=47 // pred_region
          %326 = dma.done %s319, 512
        $region52: #{tpu_custom_call.1} parent=47 // pred_fallthru
          _
        // Predicated region
        $region53: #{tpu_custom_call.1} parent=47 // pred_check
          %p327 = pneg %p188
        $region54: #{tpu_custom_call.1} parent=47 // pred_check_branch
          %329 = sbr.rel (%p327) target = $region56
        $region55: #{tpu_custom_call.1} parent=47 // pred_region
          %330 = dma.done [#allocation5], 16
        $region56: #{tpu_custom_call.1} parent=47 // pred_fallthru
          _
        %331 = sfence
        %s332 = sand.u32 %s49, 1
        %s333 = scalar_lea.sflag [#allocation3], %s332
        %s334 = sand.u32 %s49, 1
        %s335 = smul.addr %s334, 32
        %s336 = scalar_lea.vmem [#allocation2], %s335
        %p337 = pneg %p62
        %p338 = pneg %p59
        %p339 = pneg %p83
        %p340 = pneg %p80
        %p341 = pneg %p104
        %p342 = pneg %p101
        %p343 = pneg %p125
        %p344 = pneg %p122
        %p345 = pneg %p146
        %p346 = pneg %p143
        %p347 = pneg %p167
        %p348 = pneg %p164
        %p349 = pneg %p188
        %p350 = pneg %p185
        %p351 = pneg %p216
        %p352 = pneg %p213
        %s353 = sand.u32 %s203, 1
        %s354 = scalar_lea.sflag [#allocation4], %s353
        %s355 = sand.u32 %s203, 1
        %s356 = smul.addr %s355, 40
        %s357 = scalar_lea.vmem [#allocation7], %s356
        %p358 = pneg %p244
        %p359 = pneg %p241
        %p360 = scmp.lt.s32.totalorder %s31, 1
        %s361 = scalar_select %p360, %s31, 1
        %p362 = scmp.lt.s32.totalorder %s32, 0
        %s363 = scalar_select %p362, %s32, 0
        %s364 = smul.addr %s361, 4
        %s365 = sadd.s32 %s363, %s364
        %s366 = smul.addr %s365, 8
        %s367 = scalar_lea.vmem %s8, %s366
        %p368 = scmp.lt.s32.totalorder %s31, 1
        %s369 = scalar_select %p368, %s31, 1
        %p370 = scmp.lt.s32.totalorder %s32, 0
        %s371 = scalar_select %p370, %s32, 0
        %s372 = smul.addr %s369, 4
        %s373 = sadd.s32 %s371, %s372
        %s374 = smul.addr %s373, 8
        %s375 = scalar_lea.vmem %s8, %s374
        %v376 = vld [vmem:[%s322] sm:$0xff]
        %v377 = vld [vmem:[%s322 + $0x8] sm:$0xff]
        %v378 = vld [vmem:[%s322 + $0x10] sm:$0xff]
        %v379 = vld [vmem:[%s322 + $0x18] sm:$0xff]
        %v380 = vmul.f32 %v376, %v376
        %v381 = vmul.f32 %v377, %v377
        %v382 = vmul.f32 %v378, %v378
        %v383 = vmul.f32 %v379, %v379
        %vm384 = vcmask 261120
        %v385 = vsel %vm384, %v380, 0.0
        %386 = vadd.xlane.f32.xlu0 %v385
        %v387 = vpop.xlane.xlu0 %386
        %v388 = vsel %vm384, %v381, 0.0
        %389 = vadd.xlane.f32.xlu0 %v388
        %v390 = vpop.xlane.xlu0 %389
        %v391 = vsel %vm384, %v382, 0.0
        %392 = vadd.xlane.f32.xlu0 %v391
        %v393 = vpop.xlane.xlu0 %392
        %v394 = vsel %vm384, %v383, 0.0
        %395 = vadd.xlane.f32.xlu0 %v394
        %v396 = vpop.xlane.xlu0 %395
        %v397 = vmax.f32 %v387, 1e-24
        %v398 = vmax.f32 %v390, 1e-24
        %v399 = vmax.f32 %v393, 1e-24
        %v400 = vmax.f32 %v396, 1e-24
        %v401 = vrsqrt.pop %v397
        %v402 = vrsqrt.pop %v398
        %v403 = vrsqrt.pop %v399
        %v404 = vrsqrt.pop %v400
        %v405 = vmul.f32 %v376, %v401
        %v406 = vmul.f32 %v377, %v402
        %v407 = vmul.f32 %v378, %v403
        %v408 = vmul.f32 %v379, %v404
        %v409 = vld [vmem:[%s1] sm:$0x1]
        %v411 = vlaneseq
        %v412 = vshrl.u32 %v411, 7
        %v413 = vsub.s32 0, %v412
        %v414 = vrot.slane %v409, %v413
        %v416 = vmul.f32 %v405, %v414
        %v417 = vmul.f32 %v406, %v414
        %v418 = vmul.f32 %v407, %v414
        %v419 = vmul.f32 %v408, %v414
        %s420 = sld [smem:[#allocation6]]
        %s421 = sld [smem:[#allocation6 + $0x1]]
        %v422 = vld [vmem:[%s2] sm:$0x1]
        %v424 = vlaneseq
        %v425 = vshrl.u32 %v424, 7
        %v426 = vsub.s32 0, %v425
        %v427 = vrot.slane %v422, %v426
        %v429 = vmul.f32 %v416, %v427
        %v430 = vmul.f32 %v417, %v427
        %v431 = vmul.f32 %v418, %v427
        %v432 = vmul.f32 %v419, %v427
        %v433 = vsel %vm384, %v429, 0.0
        %434 = vadd.xlane.f32.xlu0 %v433
        %v435 = vpop.xlane.xlu0 %434
        %v436 = vsel %vm384, %v430, 0.0
        %437 = vadd.xlane.f32.xlu0 %v436
        %v438 = vpop.xlane.xlu0 %437
        %v439 = vsel %vm384, %v431, 0.0
        %440 = vadd.xlane.f32.xlu0 %v439
        %v441 = vpop.xlane.xlu0 %440
        %v442 = vsel %vm384, %v432, 0.0
        %443 = vadd.xlane.f32.xlu0 %v442
        %v444 = vpop.xlane.xlu0 %443
        %v445 = vtanh.pop %v435
        %v446 = vtanh.pop %v438
        %v447 = vtanh.pop %v441
        %v448 = vtanh.pop %v444
        %v449 = vstv %s420
        %v450 = vmul.f32 %v445, %v449
        %v451 = vmul.f32 %v446, %v449
        %v452 = vmul.f32 %v447, %v449
        %v453 = vmul.f32 %v448, %v449
        %v454 = vld [vmem:[%s3] sm:$0x1]
        %v455 = vld [vmem:[%s3 + $0x1] sm:$0x1]
        %v456 = vld [vmem:[%s3 + $0x2] sm:$0x1]
        %v457 = vld [vmem:[%s3 + $0x3] sm:$0x1]
        %v462 = vlaneseq
        %v463 = vshrl.u32 %v462, 7
        %v464 = vsub.s32 0, %v463
        %v465 = vrot.slane %v454, %v464
        %v466 = vlaneseq
        %v467 = vshrl.u32 %v466, 7
        %v468 = vsub.s32 0, %v467
        %v469 = vrot.slane %v455, %v468
        %v470 = vlaneseq
        %v471 = vshrl.u32 %v470, 7
        %v472 = vsub.s32 0, %v471
        %v473 = vrot.slane %v456, %v472
        %v474 = vlaneseq
        %v475 = vshrl.u32 %v474, 7
        %v476 = vsub.s32 0, %v475
        %v477 = vrot.slane %v457, %v476
        %v482 = vadd.f32 %v450, %v465
        %v483 = vadd.f32 %v451, %v469
        %v484 = vadd.f32 %v452, %v473
        %v485 = vadd.f32 %v453, %v477
        %487 = vset.pattern.permute.xlu0 0
        %488 = vperm.xlu0 %487, %v482
        %v489 = vpop.permute.xlu0 %488
        %492 = vset.pattern.permute.xlu0 0
        %493 = vperm.xlu0 %492, %v483
        %v494 = vpop.permute.xlu0 %493
        %497 = vset.pattern.permute.xlu0 0
        %498 = vperm.xlu0 %497, %v484
        %v499 = vpop.permute.xlu0 %498
        %502 = vset.pattern.permute.xlu0 0
        %503 = vperm.xlu0 %502, %v485
        %v504 = vpop.permute.xlu0 %503
        %v506 = vmul.f32 %v489, %v376
        %v507 = vmul.f32 %v494, %v377
        %v508 = vmul.f32 %v499, %v378
        %v509 = vmul.f32 %v504, %v379
        %v510 = vsel %vm384, %v506, 0.0
        %v511 = vsel %vm384, %v507, 0.0
        %v512 = vadd.f32 %v510, %v511
        %v513 = vsel %vm384, %v508, 0.0
        %v514 = vadd.f32 %v512, %v513
        %v515 = vsel %vm384, %v509, 0.0
        %v516 = vadd.f32 %v514, %v515
        %517 = vst.msk [vmem:[%s357] sm:$0xff] %vm384, %v516
        %s518 = scalar_lea.vmem %s2, 1
        %v519 = vld [vmem:[%s518] sm:$0x1]
        %v521 = vlaneseq
        %v522 = vshrl.u32 %v521, 7
        %v523 = vsub.s32 0, %v522
        %v524 = vrot.slane %v519, %v523
        %v526 = vmul.f32 %v416, %v524
        %v527 = vmul.f32 %v417, %v524
        %v528 = vmul.f32 %v418, %v524
        %v529 = vmul.f32 %v419, %v524
        %v530 = vsel %vm384, %v526, 0.0
        %531 = vadd.xlane.f32.xlu0 %v530
        %v532 = vpop.xlane.xlu0 %531
        %v533 = vsel %vm384, %v527, 0.0
        %534 = vadd.xlane.f32.xlu0 %v533
        %v535 = vpop.xlane.xlu0 %534
        %v536 = vsel %vm384, %v528, 0.0
        %537 = vadd.xlane.f32.xlu0 %v536
        %v538 = vpop.xlane.xlu0 %537
        %v539 = vsel %vm384, %v529, 0.0
        %540 = vadd.xlane.f32.xlu0 %v539
        %v541 = vpop.xlane.xlu0 %540
        %v542 = vtanh.pop %v532
        %v543 = vtanh.pop %v535
        %v544 = vtanh.pop %v538
        %v545 = vtanh.pop %v541
        %v546 = vmul.f32 %v542, %v449
        %v547 = vmul.f32 %v543, %v449
        %v548 = vmul.f32 %v544, %v449
        %v549 = vmul.f32 %v545, %v449
        %s550 = scalar_lea.vmem %s3, 4
        %v551 = vld [vmem:[%s550] sm:$0x1]
        %v552 = vld [vmem:[%s550 + $0x1] sm:$0x1]
        %v553 = vld [vmem:[%s550 + $0x2] sm:$0x1]
        %v554 = vld [vmem:[%s550 + $0x3] sm:$0x1]
        %v559 = vlaneseq
        %v560 = vshrl.u32 %v559, 7
        %v561 = vsub.s32 0, %v560
        %v562 = vrot.slane %v551, %v561
        %v563 = vlaneseq
        %v564 = vshrl.u32 %v563, 7
        %v565 = vsub.s32 0, %v564
        %v566 = vrot.slane %v552, %v565
        %v567 = vlaneseq
        %v568 = vshrl.u32 %v567, 7
        %v569 = vsub.s32 0, %v568
        %v570 = vrot.slane %v553, %v569
        %v571 = vlaneseq
        %v572 = vshrl.u32 %v571, 7
        %v573 = vsub.s32 0, %v572
        %v574 = vrot.slane %v554, %v573
        %v579 = vadd.f32 %v546, %v562
        %v580 = vadd.f32 %v547, %v566
        %v581 = vadd.f32 %v548, %v570
        %v582 = vadd.f32 %v549, %v574
        %584 = vset.pattern.permute.xlu0 0
        %585 = vperm.xlu0 %584, %v579
        %v586 = vpop.permute.xlu0 %585
        %589 = vset.pattern.permute.xlu0 0
        %590 = vperm.xlu0 %589, %v580
        %v591 = vpop.permute.xlu0 %590
        %594 = vset.pattern.permute.xlu0 0
        %595 = vperm.xlu0 %594, %v581
        %v596 = vpop.permute.xlu0 %595
        %599 = vset.pattern.permute.xlu0 0
        %600 = vperm.xlu0 %599, %v582
        %v601 = vpop.permute.xlu0 %600
        %v603 = vmul.f32 %v586, %v376
        %v604 = vmul.f32 %v591, %v377
        %v605 = vmul.f32 %v596, %v378
        %v606 = vmul.f32 %v601, %v379
        %v607 = vsel %vm384, %v603, 0.0
        %v608 = vsel %vm384, %v604, 0.0
        %v609 = vadd.f32 %v607, %v608
        %v610 = vsel %vm384, %v605, 0.0
        %v611 = vadd.f32 %v609, %v610
        %v612 = vsel %vm384, %v606, 0.0
        %v613 = vadd.f32 %v611, %v612
        %s614 = scalar_lea.vmem %s357, 8 [#allocation7]
        %615 = vst.msk [vmem:[%s614] sm:$0xff] %vm384, %v613
        %s616 = scalar_lea.vmem %s2, 2
        %v617 = vld [vmem:[%s616] sm:$0x1]
        %v619 = vlaneseq
        %v620 = vshrl.u32 %v619, 7
        %v621 = vsub.s32 0, %v620
        %v622 = vrot.slane %v617, %v621
        %v624 = vmul.f32 %v416, %v622
        %v625 = vmul.f32 %v417, %v622
        %v626 = vmul.f32 %v418, %v622
        %v627 = vmul.f32 %v419, %v622
        %v628 = vsel %vm384, %v624, 0.0
        %629 = vadd.xlane.f32.xlu0 %v628
        %v630 = vpop.xlane.xlu0 %629
        %v631 = vsel %vm384, %v625, 0.0
        %632 = vadd.xlane.f32.xlu0 %v631
        %v633 = vpop.xlane.xlu0 %632
        %v634 = vsel %vm384, %v626, 0.0
        %635 = vadd.xlane.f32.xlu0 %v634
        %v636 = vpop.xlane.xlu0 %635
        %v637 = vsel %vm384, %v627, 0.0
        %638 = vadd.xlane.f32.xlu0 %v637
        %v639 = vpop.xlane.xlu0 %638
        %v640 = vtanh.pop %v630
        %v641 = vtanh.pop %v633
        %v642 = vtanh.pop %v636
        %v643 = vtanh.pop %v639
        %v644 = vmul.f32 %v640, %v449
        %v645 = vmul.f32 %v641, %v449
        %v646 = vmul.f32 %v642, %v449
        %v647 = vmul.f32 %v643, %v449
        %s648 = scalar_lea.vmem %s3, 8
        %v649 = vld [vmem:[%s648] sm:$0x1]
        %v650 = vld [vmem:[%s648 + $0x1] sm:$0x1]
        %v651 = vld [vmem:[%s648 + $0x2] sm:$0x1]
        %v652 = vld [vmem:[%s648 + $0x3] sm:$0x1]
        %v657 = vlaneseq
        %v658 = vshrl.u32 %v657, 7
        %v659 = vsub.s32 0, %v658
        %v660 = vrot.slane %v649, %v659
        %v661 = vlaneseq
        %v662 = vshrl.u32 %v661, 7
        %v663 = vsub.s32 0, %v662
        %v664 = vrot.slane %v650, %v663
        %v665 = vlaneseq
        %v666 = vshrl.u32 %v665, 7
        %v667 = vsub.s32 0, %v666
        %v668 = vrot.slane %v651, %v667
        %v669 = vlaneseq
        %v670 = vshrl.u32 %v669, 7
        %v671 = vsub.s32 0, %v670
        %v672 = vrot.slane %v652, %v671
        %v677 = vadd.f32 %v644, %v660
        %v678 = vadd.f32 %v645, %v664
        %v679 = vadd.f32 %v646, %v668
        %v680 = vadd.f32 %v647, %v672
        %682 = vset.pattern.permute.xlu0 0
        %683 = vperm.xlu0 %682, %v677
        %v684 = vpop.permute.xlu0 %683
        %687 = vset.pattern.permute.xlu0 0
        %688 = vperm.xlu0 %687, %v678
        %v689 = vpop.permute.xlu0 %688
        %692 = vset.pattern.permute.xlu0 0
        %693 = vperm.xlu0 %692, %v679
        %v694 = vpop.permute.xlu0 %693
        %697 = vset.pattern.permute.xlu0 0
        %698 = vperm.xlu0 %697, %v680
        %v699 = vpop.permute.xlu0 %698
        %v701 = vmul.f32 %v684, %v376
        %v702 = vmul.f32 %v689, %v377
        %v703 = vmul.f32 %v694, %v378
        %v704 = vmul.f32 %v699, %v379
        %v705 = vsel %vm384, %v701, 0.0
        %v706 = vsel %vm384, %v702, 0.0
        %v707 = vadd.f32 %v705, %v706
        %v708 = vsel %vm384, %v703, 0.0
        %v709 = vadd.f32 %v707, %v708
        %v710 = vsel %vm384, %v704, 0.0
        %v711 = vadd.f32 %v709, %v710
        %s712 = scalar_lea.vmem %s357, 16 [#allocation7]
        %713 = vst.msk [vmem:[%s712] sm:$0xff] %vm384, %v711
        %s714 = scalar_lea.vmem %s2, 3
        %v715 = vld [vmem:[%s714] sm:$0x1]
        %v717 = vlaneseq
        %v718 = vshrl.u32 %v717, 7
        %v719 = vsub.s32 0, %v718
        %v720 = vrot.slane %v715, %v719
        %v722 = vmul.f32 %v416, %v720
        %v723 = vmul.f32 %v417, %v720
        %v724 = vmul.f32 %v418, %v720
        %v725 = vmul.f32 %v419, %v720
        %v726 = vsel %vm384, %v722, 0.0
        %727 = vadd.xlane.f32.xlu0 %v726
        %v728 = vpop.xlane.xlu0 %727
        %v729 = vsel %vm384, %v723, 0.0
        %730 = vadd.xlane.f32.xlu0 %v729
        %v731 = vpop.xlane.xlu0 %730
        %v732 = vsel %vm384, %v724, 0.0
        %733 = vadd.xlane.f32.xlu0 %v732
        %v734 = vpop.xlane.xlu0 %733
        %v735 = vsel %vm384, %v725, 0.0
        %736 = vadd.xlane.f32.xlu0 %v735
        %v737 = vpop.xlane.xlu0 %736
        %v738 = vtanh.pop %v728
        %v739 = vtanh.pop %v731
        %v740 = vtanh.pop %v734
        %v741 = vtanh.pop %v737
        %v742 = vmul.f32 %v738, %v449
        %v743 = vmul.f32 %v739, %v449
        %v744 = vmul.f32 %v740, %v449
        %v745 = vmul.f32 %v741, %v449
        %s746 = scalar_lea.vmem %s3, 12
        %v747 = vld [vmem:[%s746] sm:$0x1]
        %v748 = vld [vmem:[%s746 + $0x1] sm:$0x1]
        %v749 = vld [vmem:[%s746 + $0x2] sm:$0x1]
        %v750 = vld [vmem:[%s746 + $0x3] sm:$0x1]
        %v755 = vlaneseq
        %v756 = vshrl.u32 %v755, 7
        %v757 = vsub.s32 0, %v756
        %v758 = vrot.slane %v747, %v757
        %v759 = vlaneseq
        %v760 = vshrl.u32 %v759, 7
        %v761 = vsub.s32 0, %v760
        %v762 = vrot.slane %v748, %v761
        %v763 = vlaneseq
        %v764 = vshrl.u32 %v763, 7
        %v765 = vsub.s32 0, %v764
        %v766 = vrot.slane %v749, %v765
        %v767 = vlaneseq
        %v768 = vshrl.u32 %v767, 7
        %v769 = vsub.s32 0, %v768
        %v770 = vrot.slane %v750, %v769
        %v775 = vadd.f32 %v742, %v758
        %v776 = vadd.f32 %v743, %v762
        %v777 = vadd.f32 %v744, %v766
        %v778 = vadd.f32 %v745, %v770
        %780 = vset.pattern.permute.xlu0 0
        %781 = vperm.xlu0 %780, %v775
        %v782 = vpop.permute.xlu0 %781
        %785 = vset.pattern.permute.xlu0 0
        %786 = vperm.xlu0 %785, %v776
        %v787 = vpop.permute.xlu0 %786
        %790 = vset.pattern.permute.xlu0 0
        %791 = vperm.xlu0 %790, %v777
        %v792 = vpop.permute.xlu0 %791
        %795 = vset.pattern.permute.xlu0 0
        %796 = vperm.xlu0 %795, %v778
        %v797 = vpop.permute.xlu0 %796
        %v799 = vmul.f32 %v782, %v376
        %v800 = vmul.f32 %v787, %v377
        %v801 = vmul.f32 %v792, %v378
        %v802 = vmul.f32 %v797, %v379
        %v803 = vsel %vm384, %v799, 0.0
        %v804 = vsel %vm384, %v800, 0.0
        %v805 = vadd.f32 %v803, %v804
        %v806 = vsel %vm384, %v801, 0.0
        %v807 = vadd.f32 %v805, %v806
        %v808 = vsel %vm384, %v802, 0.0
        %v809 = vadd.f32 %v807, %v808
        %s810 = scalar_lea.vmem %s357, 24 [#allocation7]
        %811 = vst.msk [vmem:[%s810] sm:$0xff] %vm384, %v809
        %s812 = scalar_lea.vmem %s2, 4
        %v813 = vld [vmem:[%s812] sm:$0x1]
        %v815 = vlaneseq
        %v816 = vshrl.u32 %v815, 7
        %v817 = vsub.s32 0, %v816
        %v818 = vrot.slane %v813, %v817
        %v820 = vmul.f32 %v416, %v818
        %v821 = vmul.f32 %v417, %v818
        %v822 = vmul.f32 %v418, %v818
        %v823 = vmul.f32 %v419, %v818
        %v824 = vsel %vm384, %v820, 0.0
        %825 = vadd.xlane.f32.xlu0 %v824
        %v826 = vpop.xlane.xlu0 %825
        %v827 = vsel %vm384, %v821, 0.0
        %828 = vadd.xlane.f32.xlu0 %v827
        %v829 = vpop.xlane.xlu0 %828
        %v830 = vsel %vm384, %v822, 0.0
        %831 = vadd.xlane.f32.xlu0 %v830
        %v832 = vpop.xlane.xlu0 %831
        %v833 = vsel %vm384, %v823, 0.0
        %834 = vadd.xlane.f32.xlu0 %v833
        %v835 = vpop.xlane.xlu0 %834
        %v836 = vtanh.pop %v826
        %v837 = vtanh.pop %v829
        %v838 = vtanh.pop %v832
        %v839 = vtanh.pop %v835
        %v840 = vmul.f32 %v836, %v449
        %v841 = vmul.f32 %v837, %v449
        %v842 = vmul.f32 %v838, %v449
        %v843 = vmul.f32 %v839, %v449
        %s844 = scalar_lea.vmem %s3, 16
        %v845 = vld [vmem:[%s844] sm:$0x1]
        %v846 = vld [vmem:[%s844 + $0x1] sm:$0x1]
        %v847 = vld [vmem:[%s844 + $0x2] sm:$0x1]
        %v848 = vld [vmem:[%s844 + $0x3] sm:$0x1]
        %v853 = vlaneseq
        %v854 = vshrl.u32 %v853, 7
        %v855 = vsub.s32 0, %v854
        %v856 = vrot.slane %v845, %v855
        %v857 = vlaneseq
        %v858 = vshrl.u32 %v857, 7
        %v859 = vsub.s32 0, %v858
        %v860 = vrot.slane %v846, %v859
        %v861 = vlaneseq
        %v862 = vshrl.u32 %v861, 7
        %v863 = vsub.s32 0, %v862
        %v864 = vrot.slane %v847, %v863
        %v865 = vlaneseq
        %v866 = vshrl.u32 %v865, 7
        %v867 = vsub.s32 0, %v866
        %v868 = vrot.slane %v848, %v867
        %v873 = vadd.f32 %v840, %v856
        %v874 = vadd.f32 %v841, %v860
        %v875 = vadd.f32 %v842, %v864
        %v876 = vadd.f32 %v843, %v868
        %878 = vset.pattern.permute.xlu0 0
        %879 = vperm.xlu0 %878, %v873
        %v880 = vpop.permute.xlu0 %879
        %883 = vset.pattern.permute.xlu0 0
        %884 = vperm.xlu0 %883, %v874
        %v885 = vpop.permute.xlu0 %884
        %888 = vset.pattern.permute.xlu0 0
        %889 = vperm.xlu0 %888, %v875
        %v890 = vpop.permute.xlu0 %889
        %893 = vset.pattern.permute.xlu0 0
        %894 = vperm.xlu0 %893, %v876
        %v895 = vpop.permute.xlu0 %894
        %v897 = vmul.f32 %v880, %v376
        %v898 = vmul.f32 %v885, %v377
        %v899 = vmul.f32 %v890, %v378
        %v900 = vmul.f32 %v895, %v379
        %v901 = vsel %vm384, %v897, 0.0
        %v902 = vsel %vm384, %v898, 0.0
        %v903 = vadd.f32 %v901, %v902
        %v904 = vsel %vm384, %v899, 0.0
        %v905 = vadd.f32 %v903, %v904
        %v906 = vsel %vm384, %v900, 0.0
        %v907 = vadd.f32 %v905, %v906
        %s908 = scalar_lea.vmem %s357, 32 [#allocation7]
        %909 = vst.msk [vmem:[%s908] sm:$0xff] %vm384, %v907
        %v910 = vld [vmem:[%s4] sm:$0x1]
        %v912 = vlaneseq
        %v913 = vshrl.u32 %v912, 7
        %v914 = vsub.s32 0, %v913
        %v915 = vrot.slane %v910, %v914
        %v917 = vmul.f32 %v416, %v915
        %v918 = vmul.f32 %v417, %v915
        %v919 = vmul.f32 %v418, %v915
        %v920 = vmul.f32 %v419, %v915
        %v921 = vsel %vm384, %v917, 0.0
        %922 = vadd.xlane.f32.xlu0 %v921
        %v923 = vpop.xlane.xlu0 %922
        %v924 = vsel %vm384, %v918, 0.0
        %925 = vadd.xlane.f32.xlu0 %v924
        %v926 = vpop.xlane.xlu0 %925
        %v927 = vsel %vm384, %v919, 0.0
        %928 = vadd.xlane.f32.xlu0 %v927
        %v929 = vpop.xlane.xlu0 %928
        %v930 = vsel %vm384, %v920, 0.0
        %931 = vadd.xlane.f32.xlu0 %v930
        %v932 = vpop.xlane.xlu0 %931
        %v933 = vtanh.pop %v923
        %v934 = vtanh.pop %v926
        %v935 = vtanh.pop %v929
        %v936 = vtanh.pop %v932
        %v937 = vstv %s421
        %v938 = vmul.f32 %v933, %v937
        %v939 = vmul.f32 %v934, %v937
        %v940 = vmul.f32 %v935, %v937
        %v941 = vmul.f32 %v936, %v937
        %v942 = vld [vmem:[%s5] sm:$0x1]
        %v943 = vld [vmem:[%s5 + $0x1] sm:$0x1]
        %v944 = vld [vmem:[%s5 + $0x2] sm:$0x1]
        %v945 = vld [vmem:[%s5 + $0x3] sm:$0x1]
        %v950 = vlaneseq
        %v951 = vshrl.u32 %v950, 7
        %v952 = vsub.s32 0, %v951
        %v953 = vrot.slane %v942, %v952
        %v954 = vlaneseq
        %v955 = vshrl.u32 %v954, 7
        %v956 = vsub.s32 0, %v955
        %v957 = vrot.slane %v943, %v956
        %v958 = vlaneseq
        %v959 = vshrl.u32 %v958, 7
        %v960 = vsub.s32 0, %v959
        %v961 = vrot.slane %v944, %v960
        %v962 = vlaneseq
        %v963 = vshrl.u32 %v962, 7
        %v964 = vsub.s32 0, %v963
        %v965 = vrot.slane %v945, %v964
        %v970 = vadd.f32 %v938, %v953
        %v971 = vadd.f32 %v939, %v957
        %v972 = vadd.f32 %v940, %v961
        %v973 = vadd.f32 %v941, %v965
        %vm974 = vcmask 7168
        %975 = vst.msk [vmem:[%s375] sm:$0xff] %vm974, %v970
        %976 = vst.msk [vmem:[%s375 + $0x8] sm:$0xff] %vm974, %v971
        %977 = vst.msk [vmem:[%s375 + $0x10] sm:$0xff] %vm974, %v972
        %978 = vst.msk [vmem:[%s375 + $0x18] sm:$0xff] %vm974, %v973
        %s979 = sand.u32 %s203, 1
        %s980 = scalar_lea.sflag [#allocation4], %s979
        %s981 = sand.u32 %s203, 1
        %s982 = smul.addr %s981, 40
        %s983 = scalar_lea.vmem [#allocation7], %s982
        %p984 = scmp.lt.s32.totalorder %s31, 1
        %s985 = scalar_select %p984, %s31, 1
        %p986 = scmp.lt.s32.totalorder %s32, 0
        %s987 = scalar_select %p986, %s32, 0
        %s988 = smul.addr %s985, 4
        %s989 = sadd.s32 %s987, %s988
        %s990 = smul.addr %s989, 8
        %s991 = scalar_lea.vmem %s8, %s990
        // Predicated region
        $region57: #{tpu_custom_call.1} parent=47 // pred_check
          %p992 = pneg %p213
        $region58: #{tpu_custom_call.1} parent=47 // pred_check_branch
          %994 = sbr.rel (%p992) target = $region60
        $region59: #{tpu_custom_call.1} parent=47 // pred_region
          %s996 = ssub.s32 640, 640
          %997 = vsyncadd %s980, %s996
          %s998 = smul.addr %s31, 5
          %s999 = sadd.s32 %s32, %s998
          %s1000 = smul.addr %s999, 128
          %s1001 = scalar_lea.hbm %s7, %s1000
          %s1002 = sshll.u32 %s983, 4
          %s1003 = int_to_ptr.vmem [resolvable:$true] %s1002
          %1008 = dma.vmem_to_hbm [thread:$0]  %s1003, 640, %s1001, %s980, 128, 128, 8
        $region60: #{tpu_custom_call.1} parent=47 // pred_fallthru
          _
        // Predicated region
        $region61: #{tpu_custom_call.1} parent=47 // pred_check
          %p1009 = pneg %p241
        $region62: #{tpu_custom_call.1} parent=47 // pred_check_branch
          %1011 = sbr.rel (%p1009) target = $region64
        $region63: #{tpu_custom_call.1} parent=47 // pred_region
          _
        $region64: #{tpu_custom_call.1} parent=47 // pred_fallthru
          _
      $region48: #{tpu_custom_call.1} parent=5 // pred_fallthru
        _
      %p1012 = scmp.le.s32.totalorder 2, %s22
      // Predicated region
      $region65: #{tpu_custom_call.1} parent=5 // pred_check
        %p1013 = pneg %p1012
      $region66: #{tpu_custom_call.1} parent=5 // pred_check_branch
        %1015 = sbr.rel (%p1013) target = $region68
      $region67: #{tpu_custom_call.1} parent=5 // pred_region
        %s1016 = ssub.s32 %s22, 2
        // Predicated region
        $region69: #{tpu_custom_call.1} parent=67 // pred_check
          %p1017 = pneg %p219
        $region70: #{tpu_custom_call.1} parent=67 // pred_check_branch
          %1019 = sbr.rel (%p1017) target = $region72
        $region71: #{tpu_custom_call.1} parent=67 // pred_region
          %s1020 = sand.u32 %s204, 1
          %s1021 = scalar_lea.sflag [#allocation4], %s1020
          %s1022 = sand.u32 %s204, 1
          %s1023 = smul.addr %s1022, 40
          %s1024 = scalar_lea.vmem [#allocation7], %s1023
          %1025 = dma.done %s1021, 640
        $region72: #{tpu_custom_call.1} parent=67 // pred_fallthru
          _
        // Predicated region
        $region73: #{tpu_custom_call.1} parent=67 // pred_check
          %p1026 = pneg %p247
        $region74: #{tpu_custom_call.1} parent=67 // pred_check_branch
          %1028 = sbr.rel (%p1026) target = $region76
        $region75: #{tpu_custom_call.1} parent=67 // pred_region
          %p1029 = scmp.lt.s32.totalorder %s33, 1
          %s1030 = scalar_select %p1029, %s33, 1
          %p1031 = scmp.lt.s32.totalorder %s34, 0
          %s1032 = scalar_select %p1031, %s34, 0
          %s1033 = smul.addr %s1030, 4
          %s1034 = sadd.s32 %s1032, %s1033
          %s1035 = smul.addr %s1034, 8
          %s1036 = scalar_lea.vmem %s8, %s1035
        $region76: #{tpu_custom_call.1} parent=67 // pred_fallthru
          _
      $region68: #{tpu_custom_call.1} parent=5 // pred_fallthru
        _
    $region6: #{tpu_custom_call.1} parent=1 // loop_footer
      %s26 = sadd.s32 1, %s22
    $region7: #{tpu_custom_call.1} parent=1 // loop_footer_branch
      %21 = sbr.rel target = $region3
    $region8: #{tpu_custom_call.1} parent=1 // loop_exit
      _
    %1037 = vsyncpa [#allocation3], 1
    %s1038 = scalar_lea.sflag [#allocation3], 1
    %1039 = vsyncpa %s1038, 1
    %1040 = vsyncpa [#allocation4], 1
    %s1041 = scalar_lea.sflag [#allocation4], 1
    %1042 = vsyncpa %s1041, 1
    %1043 = vsyncpa [#allocation5], 1
    %s1044 = scalar_lea.sflag [#allocation5], 1
    %1045 = vsyncpa %s1044, 1

</llo_original>
